<compile_context>
chip_gen: v5e
topology: v5e:2x2
jax: 0.10.0
libtpu: 0.0.40
codegen_flags: <defaults>
</compile_context>

<pallas_src>
import functools

import jax
import jax.numpy as jnp
import numpy as np
from jax.experimental import pallas as pl
from jax.experimental.pallas import tpu as pltpu


def _default_params():
    matrix = np.array(
        [[1.0, 0.0, 1.402],
         [1.0, -0.344136, -0.714136],
         [1.0, 1.772, 0.0]],
        dtype=np.float32,
    ).T
    shift = np.array([0.0, -128.0, -128.0], dtype=np.float32)
    return shift, matrix


def _round_up(x, m):
    return ((x + m - 1) // m) * m


def _tpu_vmem_capacity_bytes():
    try:
        return int(pltpu.get_tpu_info().vmem_capacity_bytes)
    except Exception:
        return 64 * 1024 * 1024  # conservative (v7x-sized); safe on all parts


def _make_kernel(shift, matrix):
    # shift / matrix must be host constants: they are baked into the kernel.
    try:
        shift = np.asarray(shift, dtype=np.float32)
        matrix = np.asarray(matrix, dtype=np.float32)
    except Exception as e:  # e.g. a traced jax value under jit
        raise TypeError(
            "shift/matrix must be host-side constants (they are baked into the "
            "Pallas kernel as immediates); got traced/abstract values."
        ) from e

    # out_j = sum_k in_k * matrix[k, j] + bias_j, bias_j = sum_k shift_k * matrix[k, j]
    bias = (shift @ matrix).astype(np.float32)
    m = [[float(matrix[k, j]) for j in range(3)] for k in range(3)]
    b = [float(v) for v in bias]

    def kernel(x_ref, o_ref):
        # x_ref block: (tb, 3, ts, 128) on the primary path, (1, 3, tl) on the
        # fallback path.  Channel slicing along axis 1 works for both.
        planes = tuple(x_ref[:, k] for k in range(3))  # Y, Cb, Cr
        for j in range(3):
            acc = None
            for k in range(3):
                c = m[k][j]
                if c == 0.0:
                    continue
                term = planes[k] if c == 1.0 else planes[k] * c
                acc = term if acc is None else acc + term
            if acc is None:
                acc = jnp.zeros_like(planes[0])
            if b[j] != 0.0:
                acc = acc + b[j]
            o_ref[:, j] = acc  # per-channel, lane-dense store

    return kernel


def ycbcr_to_rgb_jpeg(image, shift=None, matrix=None):
    """image: (B, H, W, 3) float32 (YCbCr) -> (B, 3, H, W) float32 (RGB)."""
    if shift is None or matrix is None:
        d_shift, d_matrix = _default_params()
        shift = d_shift if shift is None else shift
        matrix = d_matrix if matrix is None else matrix

    B, H, W, C = image.shape
    assert C == 3, image.shape
    P = H * W

    vmem_cap = _tpu_vmem_capacity_bytes()
    # Block-size target per operand (input block == output block size).
    target = (6 << 20) if vmem_cap <= (64 << 20) else (4 << 20)

    # Layout plumbing only.  With allow_input_fusion XLA may fold this
    # transpose/reshape into the pallas_call input DMA; otherwise it is a
    # single tiled XLA transpose (still better than lane-sparse kernel reads).
    x = jnp.transpose(image, (0, 3, 1, 2))  # (B, 3, H, W)

    if P % 128 == 0:
        # Primary path: pixels reshaped to (rows, 128) -> fully lane-dense.
        rows = P // 128
        x = x.reshape(B, 3, rows, 128)

        bytes_per_row = 3 * 128 * 4
        cap = max(8, (target // bytes_per_row // 8) * 8)  # 8-aligned row tile
        if rows <= cap:
            ts = rows
            per_image_vmem = 3 * _round_up(rows, 8) * 128 * 4
            tb = int(max(1, min(B, target // max(per_image_vmem, 1))))
        else:
            ts, tb = cap, 1

        # Keep >= 2 grid steps when possible so both v7x TensorCores get work.
        if pl.cdiv(B, tb) * pl.cdiv(rows, ts) == 1:
            if B > 1:
                tb = (B + 1) // 2
            elif rows > 8:
                ts = max(8, _round_up(pl.cdiv(rows, 2), 8))

        grid = (pl.cdiv(B, tb), pl.cdiv(rows, ts))
        block = (tb, 3, ts, 128)
        index_map = lambda bi, ri: (bi, 0, ri, 0)
        blk_bytes = tb * 3 * _round_up(ts, 8) * 128 * 4
        out_shape = (B, 3, rows, 128)
    else:
        # Fallback (P % 128 != 0): keep the pixel axis flat and lane-dense,
        # tile it in multiples of 128 with a cdiv grid (only the final tile is
        # masked).  tb fixed at 1: batch is already a parallel grid axis.
        x = x.reshape(B, 3, P)

        lane_bytes = 8 * 4  # channel dim (3) pads to 8 sublanes in VMEM
        cap = max(128, (target // lane_bytes // 128) * 128)
        tl = P if P <= cap else cap
        if B == 1 and P > 128 and pl.cdiv(P, tl) == 1:
            tl = max(128, _round_up(pl.cdiv(P, 2), 128))  # >=2 steps for v7x

        grid = (B, pl.cdiv(P, tl))
        block = (1, 3, tl)
        index_map = lambda bi, ti: (bi, 0, ti)
        blk_bytes = 8 * _round_up(tl, 128) * 4
        out_shape = (B, 3, P)

    # 2 operands x 2 pipeline buffers + headroom, clamped under physical VMEM.
    vmem_limit = max(32 << 20, 4 * blk_bytes + (8 << 20))
    vmem_limit = int(min(vmem_limit, (vmem_cap * 3) // 4))

    out = pl.pallas_call(
        _make_kernel(shift, matrix),
        out_shape=jax.ShapeDtypeStruct(out_shape, jnp.float32),
        grid=grid,
        in_specs=[pl.BlockSpec(block, index_map)],
        out_specs=pl.BlockSpec(block, index_map),
        compiler_params=pltpu.CompilerParams(
            dimension_semantics=("parallel", "parallel"),
            allow_input_fusion=[True],
            vmem_limit_bytes=vmem_limit,
        ),
    )(x)
    return out.reshape(B, 3, H, W)


if __name__ == "__main__":
    key = jax.random.PRNGKey(0)
    shift_np, matrix_np = _default_params()

    def reference(img):  # pure-JAX reference matching the PyTorch module
        res = jnp.einsum("bhwk,kj->bhwj", img + jnp.asarray(shift_np),
                         jnp.asarray(matrix_np))
        return jnp.transpose(res, (0, 3, 1, 2))

    fn = jax.jit(functools.partial(ycbcr_to_rgb_jpeg,
                                   shift=shift_np, matrix=matrix_np))

    k1, k2 = jax.random.split(key)

    # Primary (lane-dense reshape) path: H*W % 128 == 0.
    img = jax.random.uniform(k1, (2, 16, 16, 3), dtype=jnp.float32) * 255.0
    out = jax.block_until_ready(fn(img))
    assert out.shape == (2, 3, 16, 16), out.shape
    np.testing.assert_allclose(np.asarray(out), np.asarray(reference(img)),
                               rtol=1e-5, atol=2e-3)

    # Fallback path: H*W % 128 != 0 (flat lane-tiled pixels).
    img2 = jax.random.uniform(k2, (2, 10, 20, 3), dtype=jnp.float32) * 255.0
    out2 = jax.block_until_ready(fn(img2))
    assert out2.shape == (2, 3, 10, 20), out2.shape
    np.testing.assert_allclose(np.asarray(out2), np.asarray(reference(img2)),
                               rtol=1e-5, atol=2e-3)

    print("KERNEL_OK")
</pallas_src>

<mosaic_0001>
module attributes {stable_mosaic.version = 11 : i64} {
  func.func @kernel(%arg0: i32, %arg1: i32, %arg2: memref<1x3x2x128xf32, #tpu.memory_space<vmem>>, %arg3: memref<1x3x2x128xf32, #tpu.memory_space<vmem>>) attributes {dimension_semantics = [#tpu.dimension_semantics<parallel>, #tpu.dimension_semantics<parallel>], iteration_bounds = array<i64: 2, 1>, scalar_prefetch = 0 : i64, scratch_operands = 0 : i64, tpu.core_type = #tpu.core_type<tc>, window_params = [{transform_indices = @transform_0, window_bounds = array<i64: 1, 3, 2, 128>}, {transform_indices = @transform_1, window_bounds = array<i64: 1, 3, 2, 128>}]} {
    %c0 = arith.constant 0 : index
    %c0_0 = arith.constant 0 : index
    %c0_1 = arith.constant 0 : index
    %c0_2 = arith.constant 0 : index
    %0 = vector.load %arg2[%c0, %c0_0, %c0_1, %c0_2] : memref<1x3x2x128xf32, #tpu.memory_space<vmem>>, vector<1x1x2x128xf32>
    %1 = vector.shape_cast %0 : vector<1x1x2x128xf32> to vector<1x2x128xf32>
    %c0_3 = arith.constant 0 : index
    %c1 = arith.constant 1 : index
    %c0_4 = arith.constant 0 : index
    %c0_5 = arith.constant 0 : index
    %2 = vector.load %arg2[%c0_3, %c1, %c0_4, %c0_5] : memref<1x3x2x128xf32, #tpu.memory_space<vmem>>, vector<1x1x2x128xf32>
    %3 = vector.shape_cast %2 : vector<1x1x2x128xf32> to vector<1x2x128xf32>
    %c0_6 = arith.constant 0 : index
    %c2 = arith.constant 2 : index
    %c0_7 = arith.constant 0 : index
    %c0_8 = arith.constant 0 : index
    %4 = vector.load %arg2[%c0_6, %c2, %c0_7, %c0_8] : memref<1x3x2x128xf32, #tpu.memory_space<vmem>>, vector<1x1x2x128xf32>
    %5 = vector.shape_cast %4 : vector<1x1x2x128xf32> to vector<1x2x128xf32>
    %cst = arith.constant 1.402000e+00 : f32
    %6 = vector.broadcast %cst : f32 to vector<1x2x128xf32>
    %7 = arith.mulf %5, %6 : vector<1x2x128xf32>
    %8 = arith.addf %1, %7 : vector<1x2x128xf32>
    %cst_9 = arith.constant -1.794560e+02 : f32
    %9 = vector.broadcast %cst_9 : f32 to vector<1x2x128xf32>
    %10 = arith.addf %8, %9 : vector<1x2x128xf32>
    %c0_10 = arith.constant 0 : index
    %c0_11 = arith.constant 0 : index
    %c0_12 = arith.constant 0 : index
    %c0_13 = arith.constant 0 : index
    %11 = vector.load %arg3[%c0_10, %c0_11, %c0_12, %c0_13] : memref<1x3x2x128xf32, #tpu.memory_space<vmem>>, vector<1x1x2x128xf32>
    %12 = vector.shape_cast %11 : vector<1x1x2x128xf32> to vector<1x2x128xf32>
    %13 = vector.shape_cast %10 : vector<1x2x128xf32> to vector<1x1x2x128xf32>
    tpu.vector_store %arg3[%c0_10, %c0_11, %c0_12, %c0_13], %13 {strides = array<i32>} : memref<1x3x2x128xf32, #tpu.memory_space<vmem>>, vector<1x1x2x128xf32>,
    %cst_14 = arith.constant -3.441360e-01 : f32
    %14 = vector.broadcast %cst_14 : f32 to vector<1x2x128xf32>
    %15 = arith.mulf %3, %14 : vector<1x2x128xf32>
    %16 = arith.addf %1, %15 : vector<1x2x128xf32>
    %cst_15 = arith.constant -7.141360e-01 : f32
    %17 = vector.broadcast %cst_15 : f32 to vector<1x2x128xf32>
    %18 = arith.mulf %5, %17 : vector<1x2x128xf32>
    %19 = arith.addf %16, %18 : vector<1x2x128xf32>
    %cst_16 = arith.constant 135.458817 : f32
    %20 = vector.broadcast %cst_16 : f32 to vector<1x2x128xf32>
    %21 = arith.addf %19, %20 : vector<1x2x128xf32>
    %c0_17 = arith.constant 0 : index
    %c1_18 = arith.constant 1 : index
    %c0_19 = arith.constant 0 : index
    %c0_20 = arith.constant 0 : index
    %22 = vector.load %arg3[%c0_17, %c1_18, %c0_19, %c0_20] : memref<1x3x2x128xf32, #tpu.memory_space<vmem>>, vector<1x1x2x128xf32>
    %23 = vector.shape_cast %22 : vector<1x1x2x128xf32> to vector<1x2x128xf32>
    %24 = vector.shape_cast %21 : vector<1x2x128xf32> to vector<1x1x2x128xf32>
    tpu.vector_store %arg3[%c0_17, %c1_18, %c0_19, %c0_20], %24 {strides = array<i32>} : memref<1x3x2x128xf32, #tpu.memory_space<vmem>>, vector<1x1x2x128xf32>,
    %cst_21 = arith.constant 1.772000e+00 : f32
    %25 = vector.broadcast %cst_21 : f32 to vector<1x2x128xf32>
    %26 = arith.mulf %3, %25 : vector<1x2x128xf32>
    %27 = arith.addf %1, %26 : vector<1x2x128xf32>
    %cst_22 = arith.constant -2.268160e+02 : f32
    %28 = vector.broadcast %cst_22 : f32 to vector<1x2x128xf32>
    %29 = arith.addf %27, %28 : vector<1x2x128xf32>
    %c0_23 = arith.constant 0 : index
    %c2_24 = arith.constant 2 : index
    %c0_25 = arith.constant 0 : index
    %c0_26 = arith.constant 0 : index
    %30 = vector.load %arg3[%c0_23, %c2_24, %c0_25, %c0_26] : memref<1x3x2x128xf32, #tpu.memory_space<vmem>>, vector<1x1x2x128xf32>
    %31 = vector.shape_cast %30 : vector<1x1x2x128xf32> to vector<1x2x128xf32>
    %32 = vector.shape_cast %29 : vector<1x2x128xf32> to vector<1x1x2x128xf32>
    tpu.vector_store %arg3[%c0_23, %c2_24, %c0_25, %c0_26], %32 {strides = array<i32>} : memref<1x3x2x128xf32, #tpu.memory_space<vmem>>, vector<1x1x2x128xf32>,
    return
  }
  func.func @transform_0(%arg0: i32, %arg1: i32) -> (i32, i32, i32, i32) {
    %c0_i32 = arith.constant 0 : i32
    %c0_i32_0 = arith.constant 0 : i32
    %c0_i32_1 = arith.constant 0 : i32
    return %arg0, %c0_i32, %arg1, %c0_i32_0 : i32, i32, i32, i32
  }
  func.func @transform_1(%arg0: i32, %arg1: i32) -> (i32, i32, i32, i32) {
    %c0_i32 = arith.constant 0 : i32
    %c0_i32_0 = arith.constant 0 : i32
    %c0_i32_1 = arith.constant 0 : i32
    return %arg0, %c0_i32, %arg1, %c0_i32_0 : i32, i32, i32, i32
  }
}

</mosaic_0001>

<llo_original>
// kernel: ycbcr_to_rgb_jpeg.1
$region0: #{ycbcr_to_rgb_jpeg.1}
  #allocation0 [shape = 'u32[]', space=smem, size = 0x4, offset = 0x4, fixed_abs, tag = 'smem constant byte address 0x4 - core index']
  #allocation1 [shape = 'u32[72,128]{1,0:T(1,128)}', space=vmem, size = 0x9000, scoped, tag = 'internal scratch']
  %s0 = inlined_call_operand.vmem [shape: f32[2,3,2,128], index: 0, kind: input, shape index: {}]
  %s1 = inlined_call_operand.vmem [shape: f32[2,3,2,128], index: 1, kind: output, shape index: {}]
  %s2 = sld [smem:[#allocation0]]
  $region37: #{ycbcr_to_rgb_jpeg.1} parent=0
    _
  %s4 = ssub.s32 1, %s2
  %s5 = scalar_select 0, %s4, %s2
  loop: start=0, step=1, limit=4
  $region2: #{ycbcr_to_rgb_jpeg.1} parent=0 // loop_pre_header
    _
  $region3: #{ycbcr_to_rgb_jpeg.1} parent=0 // loop_header
    %s7 = sphi 0, %s11
    %p8 = scmp.ge.s32.totalorder %s7, 4
    %s14 = sphi 0, %s26
    %s15 = sphi 0, %s22
    %s16 = sphi 0, %s14
    %s17 = sphi 0, %s15
    %s18 = sphi 0, %s16
    %s19 = sphi 0, %s17
    %s31 = sphi 0, %s33
    %s34 = sphi 0, %s31
    %s35 = sphi 0, %s34
    %s51 = sphi 0, %s35
    %s59 = sphi 0, %s61
    %s62 = sphi 0, %s59
    %s63 = sphi 0, %s62
    %s79 = sphi 0, %s63
  $region4: #{ycbcr_to_rgb_jpeg.1} parent=0 // loop_header_branch
    %10 = sbr.rel (%p8) target = $region8
  $region5: #{ycbcr_to_rgb_jpeg.1} parent=0 // loop_body
    %s12 = ssub.s32 %s7, 1
    %s13 = ssub.s32 %s7, 2
    %s20 = sadd.s32 1, %s15
    %p21 = scmp.ge.s32.totalorder %s20, 1
    %s22 = scalar_select %p21, 0, %s20
    %s23 = sadd.s32 1, %s14
    %s24 = scalar_select %p21, %s23, %s14
    %p25 = scmp.ge.s32.totalorder %s24, 2
    %s26 = scalar_select %p25, 0, %s24
    %s27 = ssub.s32 %s14, %s26
    %s28 = ssub.s32 %s15, %s22
    %s29 = sor.u32 %s27, %s28
    %p30 = scmp.eq.s32.totalorder %s29, 0
    %s32 = sadd.s32 %s31, 1
    %s33 = scalar_select %p30, %s31, %s32
    %p36 = pneg %p30
    %p37 = scmp.eq.s32.totalorder %s7, 1
    %p38 = por %p36, %p37
    %p39 = scmp.ne.s32.totalorder %s31, %s34
    %p40 = scmp.eq.s32.totalorder %s7, 0
    %p41 = por %p39, %p40
    %p42 = scmp.ne.s32.totalorder %s31, %s34
    %p43 = scmp.eq.s32.totalorder %s12, 1
    %p44 = por %p42, %p43
    %p45 = scmp.ne.s32.totalorder %s34, %s35
    %p46 = scmp.eq.s32.totalorder %s12, 0
    %p47 = por %p45, %p46
    %p48 = scmp.ne.s32.totalorder %s34, %s35
    %p49 = scmp.eq.s32.totalorder %s13, 1
    %p50 = por %p48, %p49
    %p52 = scmp.ne.s32.totalorder %s35, %s51
    %p53 = scmp.eq.s32.totalorder %s13, 0
    %p54 = por %p52, %p53
    %s55 = ssub.s32 %s14, %s26
    %s56 = ssub.s32 %s15, %s22
    %s57 = sor.u32 %s55, %s56
    %p58 = scmp.eq.s32.totalorder %s57, 0
    %s60 = sadd.s32 %s59, 1
    %s61 = scalar_select %p58, %s59, %s60
    %p64 = pneg %p58
    %p65 = scmp.eq.s32.totalorder %s7, 1
    %p66 = por %p64, %p65
    %p67 = scmp.ne.s32.totalorder %s59, %s62
    %p68 = scmp.eq.s32.totalorder %s7, 0
    %p69 = por %p67, %p68
    %p70 = scmp.ne.s32.totalorder %s59, %s62
    %p71 = scmp.eq.s32.totalorder %s12, 1
    %p72 = por %p70, %p71
    %p73 = scmp.ne.s32.totalorder %s62, %s63
    %p74 = scmp.eq.s32.totalorder %s12, 0
    %p75 = por %p73, %p74
    %p76 = scmp.ne.s32.totalorder %s62, %s63
    %p77 = scmp.eq.s32.totalorder %s13, 1
    %p78 = por %p76, %p77
    %p80 = scmp.ne.s32.totalorder %s63, %s79
    %p81 = scmp.eq.s32.totalorder %s13, 0
    %p82 = por %p80, %p81
    %p83 = scmp.le.s32.totalorder 1, %s7
    %p84 = scmp.lt.s32.totalorder %s7, 3
    %p85 = pnand %p83, %p84
    %p86 = pneg %p85
    // Predicated region
    $region9: #{ycbcr_to_rgb_jpeg.1} parent=5 // pred_check
      _
    $region10: #{ycbcr_to_rgb_jpeg.1} parent=5 // pred_check_branch
      %88 = sbr.rel (%p85) target = $region12
    $region11: #{ycbcr_to_rgb_jpeg.1} parent=5 // pred_region
      %s89 = ssub.s32 %s7, 1
    $region12: #{ycbcr_to_rgb_jpeg.1} parent=5 // pred_fallthru
      _
    %p90 = scmp.lt.s32.totalorder %s7, 2
    // Predicated region
    $region13: #{ycbcr_to_rgb_jpeg.1} parent=5 // pred_check
      %p91 = pneg %p90
    $region14: #{ycbcr_to_rgb_jpeg.1} parent=5 // pred_check_branch
      %93 = sbr.rel (%p91) target = $region16
    $region15: #{ycbcr_to_rgb_jpeg.1} parent=5 // pred_region
      // Predicated region
      $region17: #{ycbcr_to_rgb_jpeg.1} parent=15 // pred_check
        %p94 = pneg %p41
      $region18: #{ycbcr_to_rgb_jpeg.1} parent=15 // pred_check_branch
        %96 = sbr.rel (%p94) target = $region20
      $region19: #{ycbcr_to_rgb_jpeg.1} parent=15 // pred_region
        %p97 = scmp.lt.s32.totalorder %s14, 1
        %s98 = scalar_select %p97, %s14, 1
        %p99 = scmp.lt.s32.totalorder %s15, 0
        %s100 = scalar_select %p99, %s15, 0
        %s101 = smul.addr %s98, 3
        %s102 = sadd.s32 %s100, %s101
        %s103 = smul.addr %s102, 2
        %s104 = scalar_lea.vmem %s0, %s103
      $region20: #{ycbcr_to_rgb_jpeg.1} parent=15 // pred_fallthru
        _
    $region16: #{ycbcr_to_rgb_jpeg.1} parent=5 // pred_fallthru
      _
    %p105 = scmp.le.s32.totalorder 1, %s7
    %p106 = scmp.lt.s32.totalorder %s7, 3
    %p107 = pnand %p105, %p106
    %p108 = pneg %p107
    // Predicated region
    $region21: #{ycbcr_to_rgb_jpeg.1} parent=5 // pred_check
      _
    $region22: #{ycbcr_to_rgb_jpeg.1} parent=5 // pred_check_branch
      %110 = sbr.rel (%p107) target = $region24
    $region23: #{ycbcr_to_rgb_jpeg.1} parent=5 // pred_region
      %s111 = ssub.s32 %s7, 1
      %p112 = scmp.lt.s32.totalorder %s16, 1
      %s113 = scalar_select %p112, %s16, 1
      %p114 = scmp.lt.s32.totalorder %s17, 0
      %s115 = scalar_select %p114, %s17, 0
      %s116 = smul.addr %s113, 3
      %s117 = sadd.s32 %s115, %s116
      %s118 = smul.addr %s117, 2
      %s119 = scalar_lea.vmem %s0, %s118
      %p120 = pneg %p47
      %p121 = pneg %p44
      %p122 = pneg %p75
      %p123 = pneg %p72
      %p124 = scmp.lt.s32.totalorder %s16, 1
      %s125 = scalar_select %p124, %s16, 1
      %p126 = scmp.lt.s32.totalorder %s17, 0
      %s127 = scalar_select %p126, %s17, 0
      %s128 = smul.addr %s125, 3
      %s129 = sadd.s32 %s127, %s128
      %s130 = smul.addr %s129, 2
      %s131 = scalar_lea.vmem %s1, %s130
      %p132 = scmp.lt.s32.totalorder %s16, 1
      %s133 = scalar_select %p132, %s16, 1
      %p134 = scmp.lt.s32.totalorder %s17, 0
      %s135 = scalar_select %p134, %s17, 0
      %s136 = smul.addr %s133, 3
      %s137 = sadd.s32 %s135, %s136
      %s138 = smul.addr %s137, 2
      %s139 = scalar_lea.vmem %s0, %s138
      %p140 = scmp.lt.s32.totalorder %s16, 1
      %s141 = scalar_select %p140, %s16, 1
      %p142 = scmp.lt.s32.totalorder %s17, 0
      %s143 = scalar_select %p142, %s17, 0
      %s144 = smul.addr %s141, 3
      %s145 = sadd.s32 %s143, %s144
      %s146 = smul.addr %s145, 2
      %s147 = scalar_lea.vmem %s1, %s146
      %v148 = vld [vmem:[%s139] sm:$0x3]
      %s149 = scalar_lea.vmem %s139, 2
      %v150 = vld [vmem:[%s149] sm:$0x3]
      %s151 = scalar_lea.vmem %s139, 4
      %v152 = vld [vmem:[%s151] sm:$0x3]
      %v153 = vmul.f32 %v152, 1.402
      %v154 = vadd.f32 %v148, %v153
      %v155 = vadd.f32 %v154, -179.456
      %156 = vst [vmem:[%s147] sm:$0x3] %v155
      %v157 = vmul.f32 %v150, -0.344136
      %v158 = vadd.f32 %v148, %v157
      %v159 = vmul.f32 %v152, -0.714136
      %v160 = vadd.f32 %v158, %v159
      %v161 = vadd.f32 %v160, 135.45882
      %s162 = scalar_lea.vmem %s147, 2
      %163 = vst [vmem:[%s162] sm:$0x3] %v161
      %v164 = vmul.f32 %v150, 1.772
      %v165 = vadd.f32 %v148, %v164
      %v166 = vadd.f32 %v165, -226.816
      %s167 = scalar_lea.vmem %s147, 4
      %168 = vst [vmem:[%s167] sm:$0x3] %v166
      %p169 = scmp.lt.s32.totalorder %s16, 1
      %s170 = scalar_select %p169, %s16, 1
      %p171 = scmp.lt.s32.totalorder %s17, 0
      %s172 = scalar_select %p171, %s17, 0
      %s173 = smul.addr %s170, 3
      %s174 = sadd.s32 %s172, %s173
      %s175 = smul.addr %s174, 2
      %s176 = scalar_lea.vmem %s1, %s175
      // Predicated region
      $region25: #{ycbcr_to_rgb_jpeg.1} parent=23 // pred_check
        %p177 = pneg %p72
      $region26: #{ycbcr_to_rgb_jpeg.1} parent=23 // pred_check_branch
        %179 = sbr.rel (%p177) target = $region28
      $region27: #{ycbcr_to_rgb_jpeg.1} parent=23 // pred_region
        _
      $region28: #{ycbcr_to_rgb_jpeg.1} parent=23 // pred_fallthru
        _
    $region24: #{ycbcr_to_rgb_jpeg.1} parent=5 // pred_fallthru
      _
    %p180 = scmp.le.s32.totalorder 2, %s7
    // Predicated region
    $region29: #{ycbcr_to_rgb_jpeg.1} parent=5 // pred_check
      %p181 = pneg %p180
    $region30: #{ycbcr_to_rgb_jpeg.1} parent=5 // pred_check_branch
      %183 = sbr.rel (%p181) target = $region32
    $region31: #{ycbcr_to_rgb_jpeg.1} parent=5 // pred_region
      %s184 = ssub.s32 %s7, 2
      // Predicated region
      $region33: #{ycbcr_to_rgb_jpeg.1} parent=31 // pred_check
        %p185 = pneg %p78
      $region34: #{ycbcr_to_rgb_jpeg.1} parent=31 // pred_check_branch
        %187 = sbr.rel (%p185) target = $region36
      $region35: #{ycbcr_to_rgb_jpeg.1} parent=31 // pred_region
        %p188 = scmp.lt.s32.totalorder %s18, 1
        %s189 = scalar_select %p188, %s18, 1
        %p190 = scmp.lt.s32.totalorder %s19, 0
        %s191 = scalar_select %p190, %s19, 0
        %s192 = smul.addr %s189, 3
        %s193 = sadd.s32 %s191, %s192
        %s194 = smul.addr %s193, 2
        %s195 = scalar_lea.vmem %s1, %s194
      $region36: #{ycbcr_to_rgb_jpeg.1} parent=31 // pred_fallthru
        _
    $region32: #{ycbcr_to_rgb_jpeg.1} parent=5 // pred_fallthru
      _
  $region6: #{ycbcr_to_rgb_jpeg.1} parent=0 // loop_footer
    %s11 = sadd.s32 1, %s7
  $region7: #{ycbcr_to_rgb_jpeg.1} parent=0 // loop_footer_branch
    %6 = sbr.rel target = $region3
  $region8: #{ycbcr_to_rgb_jpeg.1} parent=0 // loop_exit
    _

</llo_original>
